<compile_context>
chip_gen: v6e
topology: v6e:2x2x1
jax: 0.10.0
libtpu: 0.0.40
codegen_flags: <defaults>
</compile_context>

<pallas_src>
import math
from functools import partial

import jax
import jax.numpy as jnp
from jax.experimental import pallas as pl
from jax.experimental.pallas import tpu as pltpu


def _round_up(x, m):
    return ((x + m - 1) // m) * m


# ----------------------------------------------------------------------------
# Kernel: per-T-tile pooling accumulate + single epilogue (matmul/bias/softmax)
# ----------------------------------------------------------------------------
def _decoder_kernel(x_ref, w_ref, b_ref, out_ref, acc_ref, *,
                    pooling, return_logits, inv_t, num_valid_classes):
    t = pl.program_id(1)
    n_t = pl.num_programs(1)

    @pl.when(t == 0)
    def _init():
        if pooling == "avg":
            acc_ref[...] = jnp.zeros(acc_ref.shape, acc_ref.dtype)
        else:  # max
            acc_ref[...] = jnp.full(acc_ref.shape, -jnp.inf, acc_ref.dtype)

    # (B_TILE, C, T_TILE) tile; accumulate in f32 regardless of input dtype.
    x = x_ref[...].astype(jnp.float32)
    if pooling == "avg":
        acc_ref[...] += jnp.sum(x, axis=-1)                    # XLU lane-reduce
    else:
        acc_ref[...] = jnp.maximum(acc_ref[...], jnp.max(x, axis=-1))

    @pl.when(t == n_t - 1)
    def _epilogue():
        pooled = acc_ref[...]                                  # (B_TILE, C) f32
        if pooling == "avg":
            pooled = pooled * inv_t                            # divide by true T
        logits = (
            jnp.dot(pooled, w_ref[...], preferred_element_type=jnp.float32)
            + b_ref[...]                                       # (1, Npad) broadcast
        )                                                      # (B_TILE, Npad)
        if not return_logits:
            n_pad = logits.shape[-1]
            if num_valid_classes != n_pad:
                # Keep padded class columns out of the softmax normaliser.
                lane = jax.lax.broadcasted_iota(jnp.int32, logits.shape, 1)
                logits = jnp.where(lane < num_valid_classes, logits, -jnp.inf)
            m = jnp.max(logits, axis=-1, keepdims=True)
            e = jnp.exp(logits - m)                            # EUP
            logits = e / jnp.sum(e, axis=-1, keepdims=True)
        out_ref[...] = logits.astype(out_ref.dtype)


# ----------------------------------------------------------------------------
# Wrapper
# ----------------------------------------------------------------------------
def conv_asr_decoder_classification(
    encoder_output, weight, bias, *, pooling="avg", return_logits=True
):
    """encoder_output: (B, C, T) f32/bf16; weight: (C, N) (torch weight transposed);
    bias: (N,) or (1, N).  Returns (B, N) f32 logits (or probabilities)."""
    if pooling not in ("avg", "max"):
        raise ValueError("Pooling type chosen is not valid. Must be either `avg` or `max`")

    B, C, T = encoder_output.shape
    Cw, N = weight.shape
    assert Cw == C, (Cw, C)
    itemsize = jnp.dtype(encoder_output.dtype).itemsize

    # --- lane-dense classifier head: pad num_classes to a multiple of 128 ---------
    n_pad = _round_up(N, 128)
    weight = jnp.asarray(weight, jnp.float32)
    bias = jnp.asarray(bias, jnp.float32).reshape(1, N)
    if n_pad != N:
        weight = jnp.pad(weight, ((0, 0), (0, n_pad - N)))
        bias = jnp.pad(bias, ((0, 0), (0, n_pad - N)))

    # --- batch tiling (outer "parallel" axis for megacore sharding) --------------
    b_tile = 8 if (B > 8 and B % 8 == 0) else B
    n_b = B // b_tile

    # --- time tiling: largest 128-multiple tile whose double-buffer fits ~8 MiB --
    budget = 8 << 20
    per_lane = 2 * b_tile * C * itemsize           # bytes per T-lane, double-buffered
    t_tile = max(128, (budget // per_lane) // 128 * 128)
    t_tile = min(t_tile, 2048, _round_up(T, 128))
    t_pad = _round_up(T, t_tile)
    if t_pad != T:
        pad_val = 0.0 if pooling == "avg" else float("-inf")
        encoder_output = jnp.pad(
            encoder_output, ((0, 0), (0, 0), (0, t_pad - T)), constant_values=pad_val
        )
    n_t = t_pad // t_tile

    # --- VMEM budget: double-buffered x blocks + resident weight/bias/out/acc ----
    vmem_needed = (
        2 * b_tile * C * t_tile * itemsize
        + C * n_pad * 4 + n_pad * 4
        + 2 * b_tile * n_pad * 4
        + b_tile * C * 4
    )
    vmem_limit = int(min(max(2 * vmem_needed, 32 << 20), 64 << 20))

    kernel = partial(
        _decoder_kernel,
        pooling=pooling,
        return_logits=return_logits,
        inv_t=1.0 / T,
        num_valid_classes=N,
    )

    out_padded = pl.pallas_call(
        kernel,
        out_shape=jax.ShapeDtypeStruct((B, n_pad), jnp.float32),
        grid_spec=pltpu.PrefetchScalarGridSpec(
            num_scalar_prefetch=0,
            grid=(n_b, n_t),
            in_specs=[
                pl.BlockSpec((b_tile, C, t_tile), lambda b, t: (b, 0, t)),  # x tile
                pl.BlockSpec((C, n_pad), lambda b, t: (0, 0)),              # weight
                pl.BlockSpec((1, n_pad), lambda b, t: (0, 0)),              # bias
            ],
            out_specs=pl.BlockSpec((b_tile, n_pad), lambda b, t: (b, 0)),
            scratch_shapes=[pltpu.VMEM((b_tile, C), jnp.float32)],          # pooled acc
        ),
        compiler_params=pltpu.CompilerParams(
            dimension_semantics=("parallel", "arbitrary"),
            vmem_limit_bytes=vmem_limit,
        ),
        cost_estimate=pl.CostEstimate(
            flops=B * C * t_pad + 2 * B * C * n_pad + B * n_pad,
            transcendentals=(0 if return_logits else B * n_pad),
            bytes_accessed=itemsize * B * C * t_pad + 4 * (C * n_pad + n_pad + B * n_pad),
        ),
    )(encoder_output, weight, bias)

    return out_padded[:, :N]


# ----------------------------------------------------------------------------
# Demo / correctness check
# ----------------------------------------------------------------------------
if __name__ == "__main__":
    key = jax.random.PRNGKey(0)

    # Small shapes consistent with the module: (batch, feat_in, timesteps) -> classes.
    # T=200 is deliberately not a multiple of 128 to exercise the pad path;
    # NUM_CLASSES=32 exercises the lane-dense (pad-to-128) head.
    B, FEAT_IN, T, NUM_CLASSES = 2, 128, 200, 32

    kx, kw, kb = jax.random.split(key, 3)
    encoder_output = jax.random.normal(kx, (B, FEAT_IN, T), jnp.float32)

    # Linear(feat_in, num_classes, bias=True): xavier_uniform weight (init_weights),
    # PyTorch-default uniform bias.  Weight stored transposed as (C, N) for pooled @ W.
    bound_w = math.sqrt(6.0 / (FEAT_IN + NUM_CLASSES))
    weight = jax.random.uniform(kw, (FEAT_IN, NUM_CLASSES), jnp.float32, -bound_w, bound_w)
    bound_b = 1.0 / math.sqrt(FEAT_IN)
    bias = jax.random.uniform(kb, (1, NUM_CLASSES), jnp.float32, -bound_b, bound_b)

    run_logits = jax.jit(
        partial(conv_asr_decoder_classification, pooling="avg", return_logits=True)
    )
    run_probs = jax.jit(
        partial(conv_asr_decoder_classification, pooling="avg", return_logits=False)
    )
    run_maxpool = jax.jit(
        partial(conv_asr_decoder_classification, pooling="max", return_logits=True)
    )

    logits = run_logits(encoder_output, weight, bias)
    probs = run_probs(encoder_output, weight, bias)
    logits_max = run_maxpool(encoder_output, weight, bias)
    # bf16 activations (halved HBM traffic), still f32-accumulated in-kernel.
    logits_bf16 = run_logits(encoder_output.astype(jnp.bfloat16), weight, bias)
    jax.block_until_ready((logits, probs, logits_max, logits_bf16))

    # Pure-JAX reference (AdaptiveAvg/MaxPool1d(1) == mean/max over the time axis).
    hp = jax.lax.Precision.HIGHEST
    pooled_avg = jnp.mean(encoder_output, axis=-1)
    pooled_max = jnp.max(encoder_output, axis=-1)
    logits_ref = jnp.dot(pooled_avg, weight, precision=hp) + bias
    probs_ref = jax.nn.softmax(logits_ref, axis=-1)
    logits_max_ref = jnp.dot(pooled_max, weight, precision=hp) + bias

    assert logits.shape == (B, NUM_CLASSES), logits.shape
    assert probs.shape == (B, NUM_CLASSES), probs.shape
    assert logits_max.shape == (B, NUM_CLASSES), logits_max.shape
    assert jnp.all(jnp.isfinite(logits))
    assert jnp.allclose(logits, logits_ref, atol=1e-2, rtol=1e-2), float(
        jnp.max(jnp.abs(logits - logits_ref))
    )
    assert jnp.allclose(probs, probs_ref, atol=1e-2, rtol=1e-2), float(
        jnp.max(jnp.abs(probs - probs_ref))
    )
    assert jnp.allclose(logits_max, logits_max_ref, atol=1e-2, rtol=1e-2), float(
        jnp.max(jnp.abs(logits_max - logits_max_ref))
    )
    assert jnp.allclose(jnp.sum(probs, axis=-1), 1.0, atol=1e-4)
    assert jnp.allclose(logits_bf16, logits_ref, atol=1e-1, rtol=1e-1), float(
        jnp.max(jnp.abs(logits_bf16 - logits_ref))
    )

    print("KERNEL_OK")
</pallas_src>

<mosaic_0001>
module attributes {stable_mosaic.version = 11 : i64} {
  func.func @_decoder_kernel(%arg0: i32, %arg1: i32, %arg2: memref<2x128x256xf32, #tpu.memory_space<vmem>>, %arg3: memref<128x128xf32, #tpu.memory_space<vmem>>, %arg4: memref<1x128xf32, #tpu.memory_space<vmem>>, %arg5: memref<2x128xf32, #tpu.memory_space<vmem>>, %arg6: memref<2x128xf32, #tpu.memory_space<vmem>>) attributes {dimension_semantics = [#tpu.dimension_semantics<parallel>, #tpu.dimension_semantics<arbitrary>], iteration_bounds = array<i64: 1, 1>, scalar_prefetch = 0 : i64, scratch_operands = 1 : i64, tpu.core_type = #tpu.core_type<tc>, window_params = [{transform_indices = @transform_0, window_bounds = array<i64: 2, 128, 256>}, {pipeline_mode = #tpu.pipeline_mode<synchronous>, transform_indices = @transform_1, window_bounds = array<i64: 128, 128>}, {pipeline_mode = #tpu.pipeline_mode<synchronous>, transform_indices = @transform_2, window_bounds = array<i64: 1, 128>}, {transform_indices = @transform_3, window_bounds = array<i64: 2, 128>}]} {
    %c0_i32 = arith.constant 0 : i32
    %0 = arith.cmpi eq, %arg1, %c0_i32 : i32
    %1 = arith.extui %0 : i1 to i32
    %c0_i32_0 = arith.constant 0 : i32
    %2 = arith.cmpi ne, %1, %c0_i32_0 : i32
    scf.if %2 {
      %cst_9 = arith.constant 0.000000e+00 : f32
      %11 = vector.broadcast %cst_9 : f32 to vector<2x128xf32>
      %c0_10 = arith.constant 0 : index
      %c0_11 = arith.constant 0 : index
      %12 = vector.load %arg6[%c0_10, %c0_11] : memref<2x128xf32, #tpu.memory_space<vmem>>, vector<2x128xf32>
      tpu.vector_store %arg6[%c0_10, %c0_11], %11 {strides = array<i32>} : memref<2x128xf32, #tpu.memory_space<vmem>>, vector<2x128xf32>,
    } else {
    }
    %c0 = arith.constant 0 : index
    %c0_1 = arith.constant 0 : index
    %c0_2 = arith.constant 0 : index
    %3 = vector.load %arg2[%c0, %c0_1, %c0_2] : memref<2x128x256xf32, #tpu.memory_space<vmem>>, vector<2x128x256xf32>
    %c0_3 = arith.constant 0 : index
    %c0_4 = arith.constant 0 : index
    %4 = vector.load %arg6[%c0_3, %c0_4] : memref<2x128xf32, #tpu.memory_space<vmem>>, vector<2x128xf32>
    %cst = arith.constant dense<0.000000e+00> : vector<2x128xf32>
    %5 = vector.multi_reduction <add>, %3, %cst [2] : vector<2x128x256xf32> to vector<2x128xf32>
    %6 = arith.addf %4, %5 : vector<2x128xf32>
    %c0_5 = arith.constant 0 : index
    %c0_6 = arith.constant 0 : index
    %7 = vector.load %arg6[%c0_5, %c0_6] : memref<2x128xf32, #tpu.memory_space<vmem>>, vector<2x128xf32>
    tpu.vector_store %arg6[%c0_5, %c0_6], %6 {strides = array<i32>} : memref<2x128xf32, #tpu.memory_space<vmem>>, vector<2x128xf32>,
    %c0_i32_7 = arith.constant 0 : i32
    %8 = arith.cmpi eq, %arg1, %c0_i32_7 : i32
    %9 = arith.extui %8 : i1 to i32
    %c0_i32_8 = arith.constant 0 : i32
    %10 = arith.cmpi ne, %9, %c0_i32_8 : i32
    scf.if %10 {
      %c0_9 = arith.constant 0 : index
      %c0_10 = arith.constant 0 : index
      %11 = vector.load %arg6[%c0_9, %c0_10] : memref<2x128xf32, #tpu.memory_space<vmem>>, vector<2x128xf32>
      %cst_11 = arith.constant 5.000000e-03 : f32
      %12 = vector.broadcast %cst_11 : f32 to vector<2x128xf32>
      %13 = arith.mulf %11, %12 : vector<2x128xf32>
      %c0_12 = arith.constant 0 : index
      %c0_13 = arith.constant 0 : index
      %14 = vector.load %arg3[%c0_12, %c0_13] : memref<128x128xf32, #tpu.memory_space<vmem>>, vector<128x128xf32>
      %cst_14 = arith.constant dense<0.000000e+00> : vector<2x128xf32>
      %15 = tpu.matmul %13, %14, %cst_14 {dimension_numbers = #tpu.dot_dimension_numbers<[1], [0], [0], [1], [0, 0, 1, 1], [], []>} : vector<2x128xf32>, vector<128x128xf32>, vector<2x128xf32> -> vector<2x128xf32>
      %c0_15 = arith.constant 0 : index
      %c0_16 = arith.constant 0 : index
      %16 = vector.load %arg4[%c0_15, %c0_16] : memref<1x128xf32, #tpu.memory_space<vmem>>, vector<1x128xf32>
      %17 = vector.broadcast %16 : vector<1x128xf32> to vector<2x128xf32>
      %18 = arith.addf %15, %17 : vector<2x128xf32>
      %c0_17 = arith.constant 0 : index
      %c0_18 = arith.constant 0 : index
      %19 = vector.load %arg5[%c0_17, %c0_18] : memref<2x128xf32, #tpu.memory_space<vmem>>, vector<2x128xf32>
      tpu.vector_store %arg5[%c0_17, %c0_18], %18 {strides = array<i32>} : memref<2x128xf32, #tpu.memory_space<vmem>>, vector<2x128xf32>,
    } else {
    }
    return
  }
  func.func @transform_0(%arg0: i32, %arg1: i32) -> (i32, i32, i32) {
    %c0_i32 = arith.constant 0 : i32
    %c0_i32_0 = arith.constant 0 : i32
    return %arg0, %c0_i32, %arg1 : i32, i32, i32
  }
  func.func @transform_1(%arg0: i32, %arg1: i32) -> (i32, i32) {
    %c0_i32 = arith.constant 0 : i32
    %c0_i32_0 = arith.constant 0 : i32
    %c0_i32_1 = arith.constant 0 : i32
    return %c0_i32, %c0_i32_0 : i32, i32
  }
  func.func @transform_2(%arg0: i32, %arg1: i32) -> (i32, i32) {
    %c0_i32 = arith.constant 0 : i32
    %c0_i32_0 = arith.constant 0 : i32
    %c0_i32_1 = arith.constant 0 : i32
    return %c0_i32, %c0_i32_0 : i32, i32
  }
  func.func @transform_3(%arg0: i32, %arg1: i32) -> (i32, i32) {
    %c0_i32 = arith.constant 0 : i32
    %c0_i32_0 = arith.constant 0 : i32
    return %arg0, %c0_i32 : i32, i32
  }
}

</mosaic_0001>

<llo_original>
// kernel: conv_asr_decoder_classification.1
$region0: #{conv_asr_decoder_classification.1}
  #allocation0 [shape = 'u32[]', space=smem, size = 0x4, offset = 0x4, fixed_abs, tag = 'smem constant byte address 0x4 - core index']
  #allocation1 [shape = 'u32[144,128]{1,0:T(1,128)}', space=vmem, size = 0x12000, scoped, tag = 'internal scratch']
  #allocation2 [shape = 'f32[2,128]{1,0:T(2,128)}', space=vmem, size = 0x400, scoped, tag = 'scratch operand']
  %s0 = inlined_call_operand.vmem [shape: f32[2,128,256], index: 0, kind: input, shape index: {}]
  %s1 = inlined_call_operand.vmem [shape: f32[128,128], index: 1, kind: input, shape index: {}]
  %s2 = inlined_call_operand.vmem [shape: f32[1,128], index: 2, kind: input, shape index: {}]
  %s3 = inlined_call_operand.hbm [shape: f32[2,128], index: 3, kind: output, shape index: {}]
  %s4 = sld [smem:[#allocation0]]
  $region30: #{conv_asr_decoder_classification.1} parent=0
    _
  %s6 = ssub.s32 1, %s4
  %s7 = scalar_select 0, %s6, %s4
  $region1: #{conv_asr_decoder_classification.1} parent=0
    #allocation3 [shape = 'u8[1024]{0}', space=vmem, size = 0x400, scoped, tag = 'output window, operand 0, single buffered']
    #allocation4 [shape = 's32[1]{0}', space=sflag, size = 0x4, scoped, tag = 'scoped memory for conv_asr_decoder_classification.1']
    %8 = vsyncpa [#allocation4], 0
    // Predicated region
    $region2: #{conv_asr_decoder_classification.1} parent=1 // pred_check
      _
    $region3: #{conv_asr_decoder_classification.1} parent=1 // pred_check_branch
      %10 = sbr.rel (0) target = $region5
    $region4: #{conv_asr_decoder_classification.1} parent=1 // pred_region
      _
    $region5: #{conv_asr_decoder_classification.1} parent=1 // pred_fallthru
      _
    // Predicated region
    $region6: #{conv_asr_decoder_classification.1} parent=1 // pred_check
      _
    $region7: #{conv_asr_decoder_classification.1} parent=1 // pred_check_branch
      %12 = sbr.rel (0) target = $region9
    $region8: #{conv_asr_decoder_classification.1} parent=1 // pred_region
      _
    $region9: #{conv_asr_decoder_classification.1} parent=1 // pred_fallthru
      _
    // Predicated region
    $region10: #{conv_asr_decoder_classification.1} parent=1 // pred_check
      _
    $region11: #{conv_asr_decoder_classification.1} parent=1 // pred_check_branch
      %14 = sbr.rel (0) target = $region13
    $region12: #{conv_asr_decoder_classification.1} parent=1 // pred_region
      _
    $region13: #{conv_asr_decoder_classification.1} parent=1 // pred_fallthru
      _
    %p15 = scmp.eq.s32.totalorder 0, 0
    // Predicated region
    $region14: #{conv_asr_decoder_classification.1} parent=1 // pred_check
      %p16 = pneg %p15
    $region15: #{conv_asr_decoder_classification.1} parent=1 // pred_check_branch
      %18 = sbr.rel (%p16) target = $region17
    $region16: #{conv_asr_decoder_classification.1} parent=1 // pred_region
      %19 = vst [vmem:[#allocation2] sm:$0x3] 0.0
    $region17: #{conv_asr_decoder_classification.1} parent=1 // pred_fallthru
      _
    %v20 = vld [vmem:[%s0] sm:$0xff]
    %v21 = vld [vmem:[%s0 + $0x8] sm:$0xff]
    %v22 = vld [vmem:[%s0 + $0x10] sm:$0xff]
    %v23 = vld [vmem:[%s0 + $0x18] sm:$0xff]
    %v24 = vld [vmem:[%s0 + $0x20] sm:$0xff]
    %v25 = vld [vmem:[%s0 + $0x28] sm:$0xff]
    %v26 = vld [vmem:[%s0 + $0x30] sm:$0xff]
    %v27 = vld [vmem:[%s0 + $0x38] sm:$0xff]
    %v28 = vld [vmem:[%s0 + $0x40] sm:$0xff]
    %v29 = vld [vmem:[%s0 + $0x48] sm:$0xff]
    %v30 = vld [vmem:[%s0 + $0x50] sm:$0xff]
    %v31 = vld [vmem:[%s0 + $0x58] sm:$0xff]
    %v32 = vld [vmem:[%s0 + $0x60] sm:$0xff]
    %v33 = vld [vmem:[%s0 + $0x68] sm:$0xff]
    %v34 = vld [vmem:[%s0 + $0x70] sm:$0xff]
    %v35 = vld [vmem:[%s0 + $0x78] sm:$0xff]
    %v36 = vld [vmem:[%s0 + $0x80] sm:$0xff]
    %v37 = vld [vmem:[%s0 + $0x88] sm:$0xff]
    %v38 = vld [vmem:[%s0 + $0x90] sm:$0xff]
    %v39 = vld [vmem:[%s0 + $0x98] sm:$0xff]
    %v40 = vld [vmem:[%s0 + $0xa0] sm:$0xff]
    %v41 = vld [vmem:[%s0 + $0xa8] sm:$0xff]
    %v42 = vld [vmem:[%s0 + $0xb0] sm:$0xff]
    %v43 = vld [vmem:[%s0 + $0xb8] sm:$0xff]
    %v44 = vld [vmem:[%s0 + $0xc0] sm:$0xff]
    %v45 = vld [vmem:[%s0 + $0xc8] sm:$0xff]
    %v46 = vld [vmem:[%s0 + $0xd0] sm:$0xff]
    %v47 = vld [vmem:[%s0 + $0xd8] sm:$0xff]
    %v48 = vld [vmem:[%s0 + $0xe0] sm:$0xff]
    %v49 = vld [vmem:[%s0 + $0xe8] sm:$0xff]
    %v50 = vld [vmem:[%s0 + $0xf0] sm:$0xff]
    %v51 = vld [vmem:[%s0 + $0xf8] sm:$0xff]
    %v52 = vld [vmem:[%s0 + $0x100] sm:$0xff]
    %v53 = vld [vmem:[%s0 + $0x108] sm:$0xff]
    %v54 = vld [vmem:[%s0 + $0x110] sm:$0xff]
    %v55 = vld [vmem:[%s0 + $0x118] sm:$0xff]
    %v56 = vld [vmem:[%s0 + $0x120] sm:$0xff]
    %v57 = vld [vmem:[%s0 + $0x128] sm:$0xff]
    %v58 = vld [vmem:[%s0 + $0x130] sm:$0xff]
    %v59 = vld [vmem:[%s0 + $0x138] sm:$0xff]
    %v60 = vld [vmem:[%s0 + $0x140] sm:$0xff]
    %v61 = vld [vmem:[%s0 + $0x148] sm:$0xff]
    %v62 = vld [vmem:[%s0 + $0x150] sm:$0xff]
    %v63 = vld [vmem:[%s0 + $0x158] sm:$0xff]
    %v64 = vld [vmem:[%s0 + $0x160] sm:$0xff]
    %v65 = vld [vmem:[%s0 + $0x168] sm:$0xff]
    %v66 = vld [vmem:[%s0 + $0x170] sm:$0xff]
    %v67 = vld [vmem:[%s0 + $0x178] sm:$0xff]
    %v68 = vld [vmem:[%s0 + $0x180] sm:$0xff]
    %v69 = vld [vmem:[%s0 + $0x188] sm:$0xff]
    %v70 = vld [vmem:[%s0 + $0x190] sm:$0xff]
    %v71 = vld [vmem:[%s0 + $0x198] sm:$0xff]
    %v72 = vld [vmem:[%s0 + $0x1a0] sm:$0xff]
    %v73 = vld [vmem:[%s0 + $0x1a8] sm:$0xff]
    %v74 = vld [vmem:[%s0 + $0x1b0] sm:$0xff]
    %v75 = vld [vmem:[%s0 + $0x1b8] sm:$0xff]
    %v76 = vld [vmem:[%s0 + $0x1c0] sm:$0xff]
    %v77 = vld [vmem:[%s0 + $0x1c8] sm:$0xff]
    %v78 = vld [vmem:[%s0 + $0x1d0] sm:$0xff]
    %v79 = vld [vmem:[%s0 + $0x1d8] sm:$0xff]
    %v80 = vld [vmem:[%s0 + $0x1e0] sm:$0xff]
    %v81 = vld [vmem:[%s0 + $0x1e8] sm:$0xff]
    %v82 = vld [vmem:[%s0 + $0x1f0] sm:$0xff]
    %v83 = vld [vmem:[%s0 + $0x1f8] sm:$0xff]
    %v84 = vld [vmem:[#allocation2] sm:$0x3]
    %v85 = vadd.f32 %v20, %v21
    %86 = vadd.xlane.f32.xlu0 %v85
    %v87 = vpop.xlane.xlu0 %86
    %v88 = vadd.f32 %v22, %v23
    %89 = vadd.xlane.f32.xlu0 %v88
    %v90 = vpop.xlane.xlu0 %89
    %v91 = vadd.f32 %v24, %v25
    %92 = vadd.xlane.f32.xlu0 %v91
    %v93 = vpop.xlane.xlu0 %92
    %v94 = vadd.f32 %v26, %v27
    %95 = vadd.xlane.f32.xlu0 %v94
    %v96 = vpop.xlane.xlu0 %95
    %v97 = vadd.f32 %v28, %v29
    %98 = vadd.xlane.f32.xlu0 %v97
    %v99 = vpop.xlane.xlu0 %98
    %v100 = vadd.f32 %v30, %v31
    %101 = vadd.xlane.f32.xlu0 %v100
    %v102 = vpop.xlane.xlu0 %101
    %v103 = vadd.f32 %v32, %v33
    %104 = vadd.xlane.f32.xlu0 %v103
    %v105 = vpop.xlane.xlu0 %104
    %v106 = vadd.f32 %v34, %v35
    %107 = vadd.xlane.f32.xlu0 %v106
    %v108 = vpop.xlane.xlu0 %107
    %v109 = vadd.f32 %v36, %v37
    %110 = vadd.xlane.f32.xlu0 %v109
    %v111 = vpop.xlane.xlu0 %110
    %v112 = vadd.f32 %v38, %v39
    %113 = vadd.xlane.f32.xlu0 %v112
    %v114 = vpop.xlane.xlu0 %113
    %v115 = vadd.f32 %v40, %v41
    %116 = vadd.xlane.f32.xlu0 %v115
    %v117 = vpop.xlane.xlu0 %116
    %v118 = vadd.f32 %v42, %v43
    %119 = vadd.xlane.f32.xlu0 %v118
    %v120 = vpop.xlane.xlu0 %119
    %v121 = vadd.f32 %v44, %v45
    %122 = vadd.xlane.f32.xlu0 %v121
    %v123 = vpop.xlane.xlu0 %122
    %v124 = vadd.f32 %v46, %v47
    %125 = vadd.xlane.f32.xlu0 %v124
    %v126 = vpop.xlane.xlu0 %125
    %v127 = vadd.f32 %v48, %v49
    %128 = vadd.xlane.f32.xlu0 %v127
    %v129 = vpop.xlane.xlu0 %128
    %v130 = vadd.f32 %v50, %v51
    %131 = vadd.xlane.f32.xlu0 %v130
    %v132 = vpop.xlane.xlu0 %131
    %v133 = vadd.f32 %v52, %v53
    %134 = vadd.xlane.f32.xlu0 %v133
    %v135 = vpop.xlane.xlu0 %134
    %v136 = vadd.f32 %v54, %v55
    %137 = vadd.xlane.f32.xlu0 %v136
    %v138 = vpop.xlane.xlu0 %137
    %v139 = vadd.f32 %v56, %v57
    %140 = vadd.xlane.f32.xlu0 %v139
    %v141 = vpop.xlane.xlu0 %140
    %v142 = vadd.f32 %v58, %v59
    %143 = vadd.xlane.f32.xlu0 %v142
    %v144 = vpop.xlane.xlu0 %143
    %v145 = vadd.f32 %v60, %v61
    %146 = vadd.xlane.f32.xlu0 %v145
    %v147 = vpop.xlane.xlu0 %146
    %v148 = vadd.f32 %v62, %v63
    %149 = vadd.xlane.f32.xlu0 %v148
    %v150 = vpop.xlane.xlu0 %149
    %v151 = vadd.f32 %v64, %v65
    %152 = vadd.xlane.f32.xlu0 %v151
    %v153 = vpop.xlane.xlu0 %152
    %v154 = vadd.f32 %v66, %v67
    %155 = vadd.xlane.f32.xlu0 %v154
    %v156 = vpop.xlane.xlu0 %155
    %v157 = vadd.f32 %v68, %v69
    %158 = vadd.xlane.f32.xlu0 %v157
    %v159 = vpop.xlane.xlu0 %158
    %v160 = vadd.f32 %v70, %v71
    %161 = vadd.xlane.f32.xlu0 %v160
    %v162 = vpop.xlane.xlu0 %161
    %v163 = vadd.f32 %v72, %v73
    %164 = vadd.xlane.f32.xlu0 %v163
    %v165 = vpop.xlane.xlu0 %164
    %v166 = vadd.f32 %v74, %v75
    %167 = vadd.xlane.f32.xlu0 %v166
    %v168 = vpop.xlane.xlu0 %167
    %v169 = vadd.f32 %v76, %v77
    %170 = vadd.xlane.f32.xlu0 %v169
    %v171 = vpop.xlane.xlu0 %170
    %v172 = vadd.f32 %v78, %v79
    %173 = vadd.xlane.f32.xlu0 %v172
    %v174 = vpop.xlane.xlu0 %173
    %v175 = vadd.f32 %v80, %v81
    %176 = vadd.xlane.f32.xlu0 %v175
    %v177 = vpop.xlane.xlu0 %176
    %v178 = vadd.f32 %v82, %v83
    %179 = vadd.xlane.f32.xlu0 %v178
    %v180 = vpop.xlane.xlu0 %179
    %v213 = vlaneseq
    %v214 = vand.u32 %v213, 127
    %v215 = vlaneseq
    %v216 = vshrl.u32 %v215, 7
    %v217 = vsub.s32 %v214, %v216
    %v218 = vrot.slane %v87, %v217
    %v219 = vadd.s32 %v214, 4294967288
    %v220 = vlaneseq
    %v221 = vshrl.u32 %v220, 7
    %v222 = vsub.s32 %v219, %v221
    %v223 = vrot.slane %v90, %v222
    %vm224 = vcmask 130112
    %v225 = vsel %vm224, %v223, %v218
    %v226 = vadd.s32 %v214, 4294967280
    %v227 = vlaneseq
    %v228 = vshrl.u32 %v227, 7
    %v229 = vsub.s32 %v226, %v228
    %v230 = vrot.slane %v93, %v229
    %vm231 = vcmask 195712
    %v232 = vsel %vm231, %v230, %v225
    %v233 = vadd.s32 %v214, 4294967272
    %v234 = vlaneseq
    %v235 = vshrl.u32 %v234, 7
    %v236 = vsub.s32 %v233, %v235
    %v237 = vrot.slane %v96, %v236
    %vm238 = vcmask 261312
    %v239 = vsel %vm238, %v237, %v232
    %v240 = vadd.s32 %v214, 4294967264
    %v241 = vlaneseq
    %v242 = vshrl.u32 %v241, 7
    %v243 = vsub.s32 %v240, %v242
    %v244 = vrot.slane %v99, %v243
    %vm245 = vcmask 326912
    %v246 = vsel %vm245, %v244, %v239
    %v247 = vadd.s32 %v214, 4294967256
    %v248 = vlaneseq
    %v249 = vshrl.u32 %v248, 7
    %v250 = vsub.s32 %v247, %v249
    %v251 = vrot.slane %v102, %v250
    %vm252 = vcmask 392512
    %v253 = vsel %vm252, %v251, %v246
    %v254 = vadd.s32 %v214, 4294967248
    %v255 = vlaneseq
    %v256 = vshrl.u32 %v255, 7
    %v257 = vsub.s32 %v254, %v256
    %v258 = vrot.slane %v105, %v257
    %vm259 = vcmask 458112
    %v260 = vsel %vm259, %v258, %v253
    %v261 = vadd.s32 %v214, 4294967240
    %v262 = vlaneseq
    %v263 = vshrl.u32 %v262, 7
    %v264 = vsub.s32 %v261, %v263
    %v265 = vrot.slane %v108, %v264
    %vm266 = vcmask 523712
    %v267 = vsel %vm266, %v265, %v260
    %v268 = vadd.s32 %v214, 4294967232
    %v269 = vlaneseq
    %v270 = vshrl.u32 %v269, 7
    %v271 = vsub.s32 %v268, %v270
    %v272 = vrot.slane %v111, %v271
    %vm273 = vcmask 589312
    %v274 = vsel %vm273, %v272, %v267
    %v275 = vadd.s32 %v214, 4294967224
    %v276 = vlaneseq
    %v277 = vshrl.u32 %v276, 7
    %v278 = vsub.s32 %v275, %v277
    %v279 = vrot.slane %v114, %v278
    %vm280 = vcmask 654912
    %v281 = vsel %vm280, %v279, %v274
    %v282 = vadd.s32 %v214, 4294967216
    %v283 = vlaneseq
    %v284 = vshrl.u32 %v283, 7
    %v285 = vsub.s32 %v282, %v284
    %v286 = vrot.slane %v117, %v285
    %vm287 = vcmask 720512
    %v288 = vsel %vm287, %v286, %v281
    %v289 = vadd.s32 %v214, 4294967208
    %v290 = vlaneseq
    %v291 = vshrl.u32 %v290, 7
    %v292 = vsub.s32 %v289, %v291
    %v293 = vrot.slane %v120, %v292
    %vm294 = vcmask 786112
    %v295 = vsel %vm294, %v293, %v288
    %v296 = vadd.s32 %v214, 4294967200
    %v297 = vlaneseq
    %v298 = vshrl.u32 %v297, 7
    %v299 = vsub.s32 %v296, %v298
    %v300 = vrot.slane %v123, %v299
    %vm301 = vcmask 851712
    %v302 = vsel %vm301, %v300, %v295
    %v303 = vadd.s32 %v214, 4294967192
    %v304 = vlaneseq
    %v305 = vshrl.u32 %v304, 7
    %v306 = vsub.s32 %v303, %v305
    %v307 = vrot.slane %v126, %v306
    %vm308 = vcmask 917312
    %v309 = vsel %vm308, %v307, %v302
    %v310 = vadd.s32 %v214, 4294967184
    %v311 = vlaneseq
    %v312 = vshrl.u32 %v311, 7
    %v313 = vsub.s32 %v310, %v312
    %v314 = vrot.slane %v129, %v313
    %vm315 = vcmask 982912
    %v316 = vsel %vm315, %v314, %v309
    %v317 = vadd.s32 %v214, 4294967176
    %v318 = vlaneseq
    %v319 = vshrl.u32 %v318, 7
    %v320 = vsub.s32 %v317, %v319
    %v321 = vrot.slane %v132, %v320
    %vm322 = vcmask 1048512
    %v323 = vsel %vm322, %v321, %v316
    %v324 = vlaneseq
    %v325 = vshrl.u32 %v324, 7
    %v326 = vsub.s32 %v214, %v325
    %v327 = vrot.slane %v135, %v326
    %v328 = vlaneseq
    %v329 = vshrl.u32 %v328, 7
    %v330 = vsub.s32 %v219, %v329
    %v331 = vrot.slane %v138, %v330
    %v332 = vsel %vm224, %v331, %v327
    %v333 = vlaneseq
    %v334 = vshrl.u32 %v333, 7
    %v335 = vsub.s32 %v226, %v334
    %v336 = vrot.slane %v141, %v335
    %v337 = vsel %vm231, %v336, %v332
    %v338 = vlaneseq
    %v339 = vshrl.u32 %v338, 7
    %v340 = vsub.s32 %v233, %v339
    %v341 = vrot.slane %v144, %v340
    %v342 = vsel %vm238, %v341, %v337
    %v343 = vlaneseq
    %v344 = vshrl.u32 %v343, 7
    %v345 = vsub.s32 %v240, %v344
    %v346 = vrot.slane %v147, %v345
    %v347 = vsel %vm245, %v346, %v342
    %v348 = vlaneseq
    %v349 = vshrl.u32 %v348, 7
    %v350 = vsub.s32 %v247, %v349
    %v351 = vrot.slane %v150, %v350
    %v352 = vsel %vm252, %v351, %v347
    %v353 = vlaneseq
    %v354 = vshrl.u32 %v353, 7
    %v355 = vsub.s32 %v254, %v354
    %v356 = vrot.slane %v153, %v355
    %v357 = vsel %vm259, %v356, %v352
    %v358 = vlaneseq
    %v359 = vshrl.u32 %v358, 7
    %v360 = vsub.s32 %v261, %v359
    %v361 = vrot.slane %v156, %v360
    %v362 = vsel %vm266, %v361, %v357
    %v363 = vlaneseq
    %v364 = vshrl.u32 %v363, 7
    %v365 = vsub.s32 %v268, %v364
    %v366 = vrot.slane %v159, %v365
    %v367 = vsel %vm273, %v366, %v362
    %v368 = vlaneseq
    %v369 = vshrl.u32 %v368, 7
    %v370 = vsub.s32 %v275, %v369
    %v371 = vrot.slane %v162, %v370
    %v372 = vsel %vm280, %v371, %v367
    %v373 = vlaneseq
    %v374 = vshrl.u32 %v373, 7
    %v375 = vsub.s32 %v282, %v374
    %v376 = vrot.slane %v165, %v375
    %v377 = vsel %vm287, %v376, %v372
    %v378 = vlaneseq
    %v379 = vshrl.u32 %v378, 7
    %v380 = vsub.s32 %v289, %v379
    %v381 = vrot.slane %v168, %v380
    %v382 = vsel %vm294, %v381, %v377
    %v383 = vlaneseq
    %v384 = vshrl.u32 %v383, 7
    %v385 = vsub.s32 %v296, %v384
    %v386 = vrot.slane %v171, %v385
    %v387 = vsel %vm301, %v386, %v382
    %v388 = vlaneseq
    %v389 = vshrl.u32 %v388, 7
    %v390 = vsub.s32 %v303, %v389
    %v391 = vrot.slane %v174, %v390
    %v392 = vsel %vm308, %v391, %v387
    %v393 = vlaneseq
    %v394 = vshrl.u32 %v393, 7
    %v395 = vsub.s32 %v310, %v394
    %v396 = vrot.slane %v177, %v395
    %v397 = vsel %vm315, %v396, %v392
    %v398 = vlaneseq
    %v399 = vshrl.u32 %v398, 7
    %v400 = vsub.s32 %v317, %v399
    %v401 = vrot.slane %v180, %v400
    %v402 = vsel %vm322, %v401, %v397
    %vm403 = vcmask 1041409
    %v404 = vsel %vm403, %v402, %v323
    %v406 = vadd.f32 %v84, %v404
    %407 = vst [vmem:[#allocation2] sm:$0x3] %v406
    // Predicated region
    $region18: #{conv_asr_decoder_classification.1} parent=1 // pred_check
      %p408 = pneg %p15
    $region19: #{conv_asr_decoder_classification.1} parent=1 // pred_check_branch
      %410 = sbr.rel (%p408) target = $region21
    $region20: #{conv_asr_decoder_classification.1} parent=1 // pred_region
      %v411 = vld [vmem:[#allocation2] sm:$0x3]
      %v412 = vmul.f32 %v411, 0.005
      %v413 = vld [vmem:[%s1] sm:$0xff]
      %v414 = vld [vmem:[%s1 + $0x8] sm:$0xff]
      %v415 = vld [vmem:[%s1 + $0x10] sm:$0xff]
      %v416 = vld [vmem:[%s1 + $0x18] sm:$0xff]
      %v417 = vld [vmem:[%s1 + $0x20] sm:$0xff]
      %v418 = vld [vmem:[%s1 + $0x28] sm:$0xff]
      %v419 = vld [vmem:[%s1 + $0x30] sm:$0xff]
      %v420 = vld [vmem:[%s1 + $0x38] sm:$0xff]
      %v421 = vld [vmem:[%s1 + $0x40] sm:$0xff]
      %v422 = vld [vmem:[%s1 + $0x48] sm:$0xff]
      %v423 = vld [vmem:[%s1 + $0x50] sm:$0xff]
      %v424 = vld [vmem:[%s1 + $0x58] sm:$0xff]
      %v425 = vld [vmem:[%s1 + $0x60] sm:$0xff]
      %v426 = vld [vmem:[%s1 + $0x68] sm:$0xff]
      %v427 = vld [vmem:[%s1 + $0x70] sm:$0xff]
      %v428 = vld [vmem:[%s1 + $0x78] sm:$0xff]
      %v429 = vld [vmem:[%s2] sm:$0x1]
      %v431 = vlaneseq
      %v432 = vshrl.u32 %v431, 7
      %v433 = vsub.s32 0, %v432
      %v434 = vrot.slane %v429, %v433
      %436 = vmatprep.subr.mxu0 0.0
      %437 = vmatpush1.msra.mxu0 %v428
      %438 = vmatprep.subr.mxu0 0.0
      %439 = vmatpush1.msra.mxu0 %v427
      %440 = vmatprep.subr.mxu0 0.0
      %441 = vmatpush1.msra.mxu0 %v426
      %442 = vmatprep.subr.mxu0 0.0
      %443 = vmatpush1.msra.mxu0 %v425
      %444 = vmatprep.subr.mxu0 0.0
      %445 = vmatpush1.msra.mxu0 %v424
      %446 = vmatprep.subr.mxu0 0.0
      %447 = vmatpush1.msra.mxu0 %v423
      %448 = vmatprep.subr.mxu0 0.0
      %449 = vmatpush1.msra.mxu0 %v422
      %450 = vmatprep.subr.mxu0 0.0
      %451 = vmatpush1.msra.mxu0 %v421
      %452 = vmatprep.subr.mxu0 0.0
      %453 = vmatpush1.msra.mxu0 %v420
      %454 = vmatprep.subr.mxu0 0.0
      %455 = vmatpush1.msra.mxu0 %v419
      %456 = vmatprep.subr.mxu0 0.0
      %457 = vmatpush1.msra.mxu0 %v418
      %458 = vmatprep.subr.mxu0 0.0
      %459 = vmatpush1.msra.mxu0 %v417
      %460 = vmatprep.subr.mxu0 0.0
      %461 = vmatpush1.msra.mxu0 %v416
      %462 = vmatprep.subr.mxu0 0.0
      %463 = vmatpush1.msra.mxu0 %v415
      %464 = vmatprep.subr.mxu0 0.0
      %465 = vmatpush1.msra.mxu0 %v414
      %466 = vmatprep.subr.mxu0 0.0
      %467 = vmatpush1.msra.mxu0 %v413
      %468 = vmatprep.subr.mxu0 0.0
      %469 = vmatpush2.msra.mxu0 0.0
      %470 = vmatprep.subr.mxu0 0.0
      %471 = vmatpush2.msra.mxu0 0.0
      %472 = vmatprep.subr.mxu0 0.0
      %473 = vmatpush2.msra.mxu0 0.0
      %474 = vmatprep.subr.mxu0 0.0
      %475 = vmatpush2.msra.mxu0 0.0
      %476 = vmatprep.subr.mxu0 0.0
      %477 = vmatpush2.msra.mxu0 0.0
      %478 = vmatprep.subr.mxu0 0.0
      %479 = vmatpush2.msra.mxu0 0.0
      %480 = vmatprep.subr.mxu0 0.0
      %481 = vmatpush2.msra.mxu0 0.0
      %482 = vmatprep.subr.mxu0 0.0
      %483 = vmatpush2.msra.mxu0 0.0
      %484 = vmatprep.subr.mxu0 0.0
      %485 = vmatpush2.msra.mxu0 0.0
      %486 = vmatprep.subr.mxu0 0.0
      %487 = vmatpush2.msra.mxu0 0.0
      %488 = vmatprep.subr.mxu0 0.0
      %489 = vmatpush2.msra.mxu0 0.0
      %490 = vmatprep.subr.mxu0 0.0
      %491 = vmatpush2.msra.mxu0 0.0
      %492 = vmatprep.subr.mxu0 0.0
      %493 = vmatpush2.msra.mxu0 0.0
      %494 = vmatprep.subr.mxu0 0.0
      %495 = vmatpush2.msra.mxu0 0.0
      %496 = vmatprep.subr.mxu0 0.0
      %497 = vmatpush2.msra.mxu0 0.0
      %498 = vmatprep.subr.mxu0 0.0
      %499 = vmatpush2.msra.mxu0 0.0
      %500 = vmatprep.mubr.f32.mxu0 0.0
      %501 = vmatmul.mubr.f32.gmra.mxu0 %v412
      %v502 = vpop.f32.mrf.mxu0
      %v503 = vadd.f32 %v434, %v502
      %v504 = vpop.f32.mrf.mxu0
      %505 = vdwg.mxu0
      %506 = vst [vmem:[#allocation3] sm:$0x3] %v503
    $region21: #{conv_asr_decoder_classification.1} parent=1 // pred_fallthru
      _
    // Predicated region
    $region22: #{conv_asr_decoder_classification.1} parent=1 // pred_check
      _
    $region23: #{conv_asr_decoder_classification.1} parent=1 // pred_check_branch
      %508 = sbr.rel (0) target = $region25
    $region24: #{conv_asr_decoder_classification.1} parent=1 // pred_region
      %s510 = ssub.s32 32, 32
      %511 = vsyncadd [#allocation4], %s510
      %s513 = sshll.u32 [#allocation3], 4
      %s514 = int_to_ptr.vmem [resolvable:$true] %s513
      %516 = dma.vmem_to_hbm [thread:$0]  %s514, 32, %s3, [#allocation4]
    $region25: #{conv_asr_decoder_classification.1} parent=1 // pred_fallthru
      _
    // Predicated region
    $region26: #{conv_asr_decoder_classification.1} parent=1 // pred_check
      _
    $region27: #{conv_asr_decoder_classification.1} parent=1 // pred_check_branch
      %518 = sbr.rel (0) target = $region29
    $region28: #{conv_asr_decoder_classification.1} parent=1 // pred_region
      %519 = dma.done [#allocation4], 32
    $region29: #{conv_asr_decoder_classification.1} parent=1 // pred_fallthru
      _
    %520 = vsyncpa [#allocation4], 1

</llo_original>
